<compile_context>
chip_gen: v7x
topology: tpu7x:2x2x1
jax: 0.10.0
libtpu: 0.0.40
codegen_flags: <defaults>
</compile_context>

<pallas_src>
import math
from functools import partial

import jax
import jax.numpy as jnp
from jax import lax
from jax.experimental import pallas as pl
from jax.experimental.pallas import tpu as pltpu


# ----------------------------- Pallas kernel --------------------------------
def _make_kernel(*, use_ff, use_pos_encoding, use_layer_norm, B, S):
    bf16 = jnp.bfloat16

    def kernel(*refs):
        it = iter(refs)
        tok_ref = next(it)                                   # (BS, 1) int32
        emb_ref = next(it)                                   # (Vemb, D) bf16
        pe_ref = next(it) if use_pos_encoding else None      # (S, D) f32
        wq_ref = next(it)                                    # (D, D) bf16, pre-scaled 1/sqrt(dh)
        wk_ref = next(it)                                    # (D, D) bf16
        wv_ref = next(it)                                    # (D, D) bf16
        wo_ref = next(it)                                    # (D, D) bf16
        hmask_ref = next(it)                                 # (H*BS, D) bf16 block-diag head mask
        smask_ref = next(it)                                 # (BS, H*BS) f32 additive causal+batch mask
        ln1w_ref = next(it) if use_layer_norm else None      # (1, D) f32
        ln1b_ref = next(it) if use_layer_norm else None
        if use_ff:
            ln2w_ref = next(it) if use_layer_norm else None
            ln2b_ref = next(it) if use_layer_norm else None
            win_ref = next(it)                               # (D, F) bf16
            bin_ref = next(it)                               # (1, F) f32
            wout_ref = next(it)                              # (F, D) bf16
            bout_ref = next(it)                              # (1, D) f32
        wu_ref = next(it)                                    # (D, Vp) bf16 lane-dense
        out_ref = next(it)                                   # (BS, Vp) f32

        Vemb, D = emb_ref.shape
        BS = B * S

        # ---- embedding gather: 128-lane bf16 one-hot, one MXU pass ----
        # (token ids are assumed < Vemb; out-of-range ids would yield zeros)
        ids = tok_ref[...]                                   # (BS, 1)
        iota = lax.broadcasted_iota(jnp.int32, (BS, Vemb), 1)
        onehot = (iota == ids).astype(bf16)                  # exact in bf16
        x = jnp.dot(onehot, emb_ref[...],
                    preferred_element_type=jnp.float32)      # (BS, D) f32
        if use_pos_encoding:
            # broadcast (S, D) PE over the batch in-kernel (no host tiling)
            x = x + jnp.concatenate([pe_ref[...]] * B, axis=0)

        def layer_norm(h, w_ref, b_ref):                     # f32 VPU/XLU math
            mu = jnp.mean(h, axis=-1, keepdims=True)
            var = jnp.mean((h - mu) ** 2, axis=-1, keepdims=True)
            return (h - mu) * lax.rsqrt(var + 1e-5) * w_ref[...] + b_ref[...]

        # ---- causal multi-head attention: heads stay on the lane axis ----
        h1 = layer_norm(x, ln1w_ref, ln1b_ref) if use_layer_norm else x
        h1_bf = h1.astype(bf16)
        q = jnp.dot(h1_bf, wq_ref[...],
                    preferred_element_type=jnp.float32).astype(bf16)   # (BS, D)
        k = jnp.dot(h1_bf, wk_ref[...],
                    preferred_element_type=jnp.float32).astype(bf16)
        v = jnp.dot(h1_bf, wv_ref[...],
                    preferred_element_type=jnp.float32).astype(bf16)

        hmask = hmask_ref[...]                               # (H*BS, D) bf16
        HB = hmask.shape[0]
        n_rep = HB // BS

        def blockdiag(a):
            # (BS, D) -> (H*BS, D): replicate along rows, zero lanes that do
            # not belong to the row group's head (row copies / VPU mul only,
            # no lane movement).
            rep = jnp.concatenate([a] * n_rep, axis=0)       # (H*BS, D)
            return rep * hmask

        k_bd = blockdiag(k)
        v_bd = blockdiag(v)

        # scores[t, (h, t')] = <q[t, head-h lanes], k[t', head-h lanes]>
        scores = lax.dot_general(q, k_bd, (((1,), (1,)), ((), ())),
                                 preferred_element_type=jnp.float32)   # (BS, H*BS)
        scores = scores + smask_ref[...]                     # causal + same-batch (-1e30)
        # row-wide max is a constant shift per head segment -> softmax unchanged
        m = jnp.max(scores, axis=-1, keepdims=True)
        e = jnp.exp(scores - m)                              # masked entries -> 0
        e_bf = e.astype(bf16)
        ctx_un = jnp.dot(e_bf, v_bd,
                         preferred_element_type=jnp.float32)            # (BS, D)
        denom = jnp.dot(e_bf, hmask,
                        preferred_element_type=jnp.float32)             # (BS, D)
        ctx = ctx_un * pl.reciprocal(denom, approx=True)
        attn = jnp.dot(ctx.astype(bf16), wo_ref[...],
                       preferred_element_type=jnp.float32)
        x = x + attn

        # ---- feed-forward (pre-LN, ReLU) ----
        if use_ff:
            h2 = layer_norm(x, ln2w_ref, ln2b_ref) if use_layer_norm else x
            hid = jnp.dot(h2.astype(bf16), win_ref[...],
                          preferred_element_type=jnp.float32) + bin_ref[...]
            hid = jnp.maximum(hid, 0.0)
            ff = jnp.dot(hid.astype(bf16), wout_ref[...],
                         preferred_element_type=jnp.float32) + bout_ref[...]
            x = x + ff

        # ---- unembed (lane-dense, padded to a multiple of 128) ----
        logits = jnp.dot(x.astype(bf16), wu_ref[...],
                         preferred_element_type=jnp.float32)            # (BS, Vp)
        out_ref[...] = logits.astype(out_ref.dtype)

    return kernel


# -------------------- one-time (model-load) parameter prep -------------------
def prepare_params(params, *, batch_size, n_heads, use_ff, use_pos_encoding,
                   use_layer_norm):
    """Padding / bf16 casts / weight folding / mask precompute — run ONCE."""
    bf16, f32 = jnp.bfloat16, jnp.float32
    V1, D = params["token_embed"].shape
    S = params["pos_encoding"].shape[0]
    B = batch_size
    BS = B * S
    H = n_heads
    dh = D // H
    Vemb = ((V1 + 127) // 128) * 128      # 128-lane one-hot width
    Vout = ((V1 + 127) // 128) * 128      # lane-dense unembed width

    prep = {}
    prep["emb"] = jnp.zeros((Vemb, D), f32).at[:V1].set(
        params["token_embed"].astype(f32)).astype(bf16)
    # fold 1/sqrt(dh) attention scale into the Q projection
    prep["wq"] = (params["wq"].astype(f32) / math.sqrt(dh)).astype(bf16)
    prep["wk"] = params["wk"].astype(bf16)
    prep["wv"] = params["wv"].astype(bf16)
    prep["wo"] = params["wo"].astype(bf16)
    prep["wu"] = jnp.zeros((D, Vout), f32).at[:, :V1].set(
        params["w_unembed"].astype(f32)).astype(bf16)

    # block-diagonal head mask (H*BS, D): 1 where the row group's head owns the lane
    row_h = jnp.arange(H * BS) // BS
    lane_h = jnp.arange(D) // dh
    prep["head_mask"] = (row_h[:, None] == lane_h[None, :]).astype(bf16)

    # additive causal + same-batch mask (BS, H*BS); columns ordered (head, b', s')
    tq = jnp.arange(BS)
    bq, sq = tq // S, tq % S
    col = jnp.arange(H * BS)
    tk = col % BS
    bk, sk = tk // S, tk % S
    valid = (bq[:, None] == bk[None, :]) & (sk[None, :] <= sq[:, None])
    prep["score_mask"] = jnp.where(valid, 0.0, -1e30).astype(f32)

    if use_pos_encoding:
        prep["pe"] = params["pos_encoding"].astype(f32)
    if use_layer_norm:
        prep["ln1_w"] = params["ln1_w"].astype(f32)
        prep["ln1_b"] = params["ln1_b"].astype(f32)
    if use_ff:
        if use_layer_norm:
            prep["ln2_w"] = params["ln2_w"].astype(f32)
            prep["ln2_b"] = params["ln2_b"].astype(f32)
        prep["w_in"] = params["w_in"].astype(bf16)
        prep["b_in"] = params["b_in"].astype(f32)
        prep["w_out"] = params["w_out"].astype(bf16)
        prep["b_out"] = params["b_out"].astype(f32)
    return prep


# ------------------------------ jitted forward --------------------------------
@partial(jax.jit, static_argnames=("adjusted_vocab_size", "use_ff",
                                   "use_pos_encoding", "use_layer_norm"))
def trigram_forward(tokens, prep, *, adjusted_vocab_size, use_ff,
                    use_pos_encoding, use_layer_norm):
    B, S = tokens.shape
    BS = B * S
    Vout = prep["wu"].shape[1]

    tok = tokens.reshape(BS, 1).astype(jnp.int32)

    args = [tok, prep["emb"]]
    if use_pos_encoding:
        args.append(prep["pe"])
    args += [prep["wq"], prep["wk"], prep["wv"], prep["wo"],
             prep["head_mask"], prep["score_mask"]]
    if use_layer_norm:
        args += [prep["ln1_w"], prep["ln1_b"]]
    if use_ff:
        if use_layer_norm:
            args += [prep["ln2_w"], prep["ln2_b"]]
        args += [prep["w_in"], prep["b_in"], prep["w_out"], prep["b_out"]]
    args.append(prep["wu"])

    kernel = _make_kernel(use_ff=use_ff, use_pos_encoding=use_pos_encoding,
                          use_layer_norm=use_layer_norm, B=B, S=S)

    vmem_spec = pl.BlockSpec(memory_space=pltpu.MemorySpace.VMEM)
    logits_padded = pl.pallas_call(
        kernel,
        out_shape=jax.ShapeDtypeStruct((BS, Vout), jnp.float32),
        in_specs=[vmem_spec] * len(args),
        out_specs=vmem_spec,
        # tiny working set (~100 KB); limit leaves ample headroom even on
        # v7x's 64 MiB physical VMEM.
        compiler_params=pltpu.CompilerParams(vmem_limit_bytes=32 * 1024 * 1024),
    )(*args)

    return logits_padded.reshape(B, S, Vout)[:, :, :adjusted_vocab_size]


# --------------------------- pure-JAX reference ------------------------------
def trigram_reference(tokens, params, *, n_heads, use_ff, use_pos_encoding,
                      use_layer_norm):
    x = jnp.take(params["token_embed"], tokens, axis=0)
    if use_pos_encoding:
        x = x + params["pos_encoding"][None]
    B, S, D = x.shape
    dh = D // n_heads

    def ln(h, w, b):
        mu = jnp.mean(h, axis=-1, keepdims=True)
        var = jnp.mean((h - mu) ** 2, axis=-1, keepdims=True)
        return (h - mu) * lax.rsqrt(var + 1e-5) * w + b

    h = ln(x, params["ln1_w"], params["ln1_b"]) if use_layer_norm else x
    q = (h @ params["wq"]).reshape(B, S, n_heads, dh)
    k = (h @ params["wk"]).reshape(B, S, n_heads, dh)
    v = (h @ params["wv"]).reshape(B, S, n_heads, dh)
    scores = jnp.einsum("bqhd,bkhd->bhqk", q, k) / math.sqrt(dh)
    causal = jnp.tril(jnp.ones((S, S), bool))
    scores = jnp.where(causal[None, None], scores, -1e30)
    p = jax.nn.softmax(scores, axis=-1)
    attn = jnp.einsum("bhqk,bkhd->bqhd", p, v).reshape(B, S, D) @ params["wo"]
    x = x + attn
    if use_ff:
        h2 = ln(x, params["ln2_w"], params["ln2_b"]) if use_layer_norm else x
        hid = jnp.maximum(h2 @ params["w_in"] + params["b_in"], 0.0)
        x = x + hid @ params["w_out"] + params["b_out"]
    return x @ params["w_unembed"]


def sinusoidal_pe(seq_len, d_model):
    pos = jnp.arange(seq_len, dtype=jnp.float32)[:, None]
    div = jnp.exp(jnp.arange(0, d_model, 2, dtype=jnp.float32)
                  * (-math.log(10000.0) / d_model))
    pe = jnp.zeros((seq_len, d_model), jnp.float32)
    pe = pe.at[:, 0::2].set(jnp.sin(pos * div))
    pe = pe.at[:, 1::2].set(jnp.cos(pos * div))
    return pe


# --------------------------------- main --------------------------------------
if __name__ == "__main__":
    # TrigramModelConfig (small, deterministic)
    vocab_size, seq_len, d_model, n_heads, ff_fanout = 32, 8, 32, 4, 4
    use_ff, use_pos_encoding = True, True
    use_layer_norm = use_ff                       # block gets use_layer_norm=cfg.use_ff
    V1 = vocab_size + 1                           # adjusted_vocab_size
    F = d_model * ff_fanout
    B = 2

    key = jax.random.PRNGKey(0)
    ks = jax.random.split(key, 12)
    init = lambda k, shape, s=0.05: (s * jax.random.normal(k, shape)).astype(jnp.float32)

    params = dict(
        token_embed=init(ks[0], (V1, d_model)),
        pos_encoding=sinusoidal_pe(seq_len, d_model),
        wq=init(ks[1], (d_model, d_model)),
        wk=init(ks[2], (d_model, d_model)),
        wv=init(ks[3], (d_model, d_model)),
        wo=init(ks[4], (d_model, d_model)),
        ln1_w=jnp.ones((1, d_model), jnp.float32),
        ln1_b=jnp.zeros((1, d_model), jnp.float32),
        ln2_w=jnp.ones((1, d_model), jnp.float32),
        ln2_b=jnp.zeros((1, d_model), jnp.float32),
        w_in=init(ks[5], (d_model, F)),
        b_in=init(ks[6], (1, F)),
        w_out=init(ks[7], (F, d_model)),
        b_out=init(ks[8], (1, d_model)),
        w_unembed=init(ks[9], (d_model, V1)),
    )

    tokens = jax.random.randint(ks[10], (B, seq_len), 0, V1, dtype=jnp.int32)

    flags = dict(n_heads=n_heads, use_ff=use_ff,
                 use_pos_encoding=use_pos_encoding, use_layer_norm=use_layer_norm)

    # one-time prep (model-load time) — per-call forward does no host padding/casts
    prep = prepare_params(params, batch_size=B, **flags)
    prep = jax.tree_util.tree_map(jax.block_until_ready, prep)

    logits = trigram_forward(tokens, prep, adjusted_vocab_size=V1,
                             use_ff=use_ff, use_pos_encoding=use_pos_encoding,
                             use_layer_norm=use_layer_norm)
    logits = jax.block_until_ready(logits)

    ref = trigram_reference(tokens, params, **flags)
    assert logits.shape == (B, seq_len, V1), logits.shape
    # bf16 MXU operands (f32 accumulation), bf16 embedding table and softmax
    # numerator/denominator, and approx reciprocal -> slightly wider tolerance
    # than pure-f32; observed error is O(1e-3) at these magnitudes.
    assert jnp.max(jnp.abs(logits - ref)) < 2e-2, float(jnp.max(jnp.abs(logits - ref)))

    print("KERNEL_OK")
</pallas_src>

<mosaic_0001>
module attributes {stable_mosaic.version = 11 : i64} {
  func.func @kernel(%arg0: memref<16x1xi32, #tpu.memory_space<vmem>>, %arg1: memref<128x32xbf16, #tpu.memory_space<vmem>>, %arg2: memref<8x32xf32, #tpu.memory_space<vmem>>, %arg3: memref<32x32xbf16, #tpu.memory_space<vmem>>, %arg4: memref<32x32xbf16, #tpu.memory_space<vmem>>, %arg5: memref<32x32xbf16, #tpu.memory_space<vmem>>, %arg6: memref<32x32xbf16, #tpu.memory_space<vmem>>, %arg7: memref<64x32xbf16, #tpu.memory_space<vmem>>, %arg8: memref<16x64xf32, #tpu.memory_space<vmem>>, %arg9: memref<1x32xf32, #tpu.memory_space<vmem>>, %arg10: memref<1x32xf32, #tpu.memory_space<vmem>>, %arg11: memref<1x32xf32, #tpu.memory_space<vmem>>, %arg12: memref<1x32xf32, #tpu.memory_space<vmem>>, %arg13: memref<32x128xbf16, #tpu.memory_space<vmem>>, %arg14: memref<1x128xf32, #tpu.memory_space<vmem>>, %arg15: memref<128x32xbf16, #tpu.memory_space<vmem>>, %arg16: memref<1x32xf32, #tpu.memory_space<vmem>>, %arg17: memref<32x128xbf16, #tpu.memory_space<vmem>>, %arg18: memref<16x128xf32, #tpu.memory_space<vmem>>) attributes {dimension_semantics = [], scalar_prefetch = 0 : i64, scratch_operands = 0 : i64, tpu.core_type = #tpu.core_type<tc>} {
    %c0 = arith.constant 0 : index
    %c0_0 = arith.constant 0 : index
    %0 = vector.load %arg0[%c0, %c0_0] : memref<16x1xi32, #tpu.memory_space<vmem>>, vector<16x1xi32>
    %1 = tpu.iota {dimensions = array<i32: 1>} : vector<16x128xi32>
    %2 = vector.broadcast %0 : vector<16x1xi32> to vector<16x128xi32>
    %3 = arith.cmpi eq, %1, %2 : vector<16x128xi32>
    %4 = arith.extui %3 : vector<16x128xi1> to vector<16x128xi32>
    %5 = arith.sitofp %4 : vector<16x128xi32> to vector<16x128xf32>
    %6 = arith.truncf %5 : vector<16x128xf32> to vector<16x128xbf16>
    %c0_1 = arith.constant 0 : index
    %c0_2 = arith.constant 0 : index
    %7 = vector.load %arg1[%c0_1, %c0_2] : memref<128x32xbf16, #tpu.memory_space<vmem>>, vector<128x32xbf16>
    %cst = arith.constant dense<0.000000e+00> : vector<16x32xf32>
    %8 = tpu.matmul %6, %7, %cst {dimension_numbers = #tpu.dot_dimension_numbers<[1], [0], [0], [1], [0, 0, 1, 1], [], []>} : vector<16x128xbf16>, vector<128x32xbf16>, vector<16x32xf32> -> vector<16x32xf32>
    %c0_3 = arith.constant 0 : index
    %c0_4 = arith.constant 0 : index
    %9 = vector.load %arg2[%c0_3, %c0_4] : memref<8x32xf32, #tpu.memory_space<vmem>>, vector<8x32xf32>
    %10 = tpu.concatenate %9, %9 in 0 : vector<8x32xf32>, vector<8x32xf32> -> vector<16x32xf32>
    %11 = arith.addf %8, %10 : vector<16x32xf32>
    %cst_5 = arith.constant dense<0.000000e+00> : vector<16xf32>
    %12 = vector.multi_reduction <add>, %11, %cst_5 [1] : vector<16x32xf32> to vector<16xf32>
    %13 = vector.shape_cast %12 : vector<16xf32> to vector<16x1xf32>
    %cst_6 = arith.constant 3.200000e+01 : f32
    %14 = vector.broadcast %cst_6 : f32 to vector<16x1xf32>
    %15 = arith.divf %13, %14 : vector<16x1xf32>
    %16 = vector.broadcast %15 : vector<16x1xf32> to vector<16x32xf32>
    %17 = arith.subf %11, %16 : vector<16x32xf32>
    %18 = arith.mulf %17, %17 : vector<16x32xf32>
    %cst_7 = arith.constant dense<0.000000e+00> : vector<16xf32>
    %19 = vector.multi_reduction <add>, %18, %cst_7 [1] : vector<16x32xf32> to vector<16xf32>
    %20 = vector.shape_cast %19 : vector<16xf32> to vector<16x1xf32>
    %cst_8 = arith.constant 3.200000e+01 : f32
    %21 = vector.broadcast %cst_8 : f32 to vector<16x1xf32>
    %22 = arith.divf %20, %21 : vector<16x1xf32>
    %23 = vector.broadcast %15 : vector<16x1xf32> to vector<16x32xf32>
    %24 = arith.subf %11, %23 : vector<16x32xf32>
    %cst_9 = arith.constant 9.99999974E-6 : f32
    %25 = vector.broadcast %cst_9 : f32 to vector<16x1xf32>
    %26 = arith.addf %22, %25 : vector<16x1xf32>
    %27 = math.rsqrt %26 : vector<16x1xf32>
    %28 = vector.broadcast %27 : vector<16x1xf32> to vector<16x32xf32>
    %29 = arith.mulf %24, %28 : vector<16x32xf32>
    %c0_10 = arith.constant 0 : index
    %c0_11 = arith.constant 0 : index
    %30 = vector.load %arg9[%c0_10, %c0_11] : memref<1x32xf32, #tpu.memory_space<vmem>>, vector<1x32xf32>
    %31 = vector.broadcast %30 : vector<1x32xf32> to vector<16x32xf32>
    %32 = arith.mulf %29, %31 : vector<16x32xf32>
    %c0_12 = arith.constant 0 : index
    %c0_13 = arith.constant 0 : index
    %33 = vector.load %arg10[%c0_12, %c0_13] : memref<1x32xf32, #tpu.memory_space<vmem>>, vector<1x32xf32>
    %34 = vector.broadcast %33 : vector<1x32xf32> to vector<16x32xf32>
    %35 = arith.addf %32, %34 : vector<16x32xf32>
    %36 = arith.truncf %35 : vector<16x32xf32> to vector<16x32xbf16>
    %c0_14 = arith.constant 0 : index
    %c0_15 = arith.constant 0 : index
    %37 = vector.load %arg3[%c0_14, %c0_15] : memref<32x32xbf16, #tpu.memory_space<vmem>>, vector<32x32xbf16>
    %cst_16 = arith.constant dense<0.000000e+00> : vector<16x32xf32>
    %38 = tpu.matmul %36, %37, %cst_16 {dimension_numbers = #tpu.dot_dimension_numbers<[1], [0], [0], [1], [0, 0, 1, 1], [], []>} : vector<16x32xbf16>, vector<32x32xbf16>, vector<16x32xf32> -> vector<16x32xf32>
    %39 = arith.truncf %38 : vector<16x32xf32> to vector<16x32xbf16>
    %c0_17 = arith.constant 0 : index
    %c0_18 = arith.constant 0 : index
    %40 = vector.load %arg4[%c0_17, %c0_18] : memref<32x32xbf16, #tpu.memory_space<vmem>>, vector<32x32xbf16>
    %cst_19 = arith.constant dense<0.000000e+00> : vector<16x32xf32>
    %41 = tpu.matmul %36, %40, %cst_19 {dimension_numbers = #tpu.dot_dimension_numbers<[1], [0], [0], [1], [0, 0, 1, 1], [], []>} : vector<16x32xbf16>, vector<32x32xbf16>, vector<16x32xf32> -> vector<16x32xf32>
    %42 = arith.truncf %41 : vector<16x32xf32> to vector<16x32xbf16>
    %c0_20 = arith.constant 0 : index
    %c0_21 = arith.constant 0 : index
    %43 = vector.load %arg5[%c0_20, %c0_21] : memref<32x32xbf16, #tpu.memory_space<vmem>>, vector<32x32xbf16>
    %cst_22 = arith.constant dense<0.000000e+00> : vector<16x32xf32>
    %44 = tpu.matmul %36, %43, %cst_22 {dimension_numbers = #tpu.dot_dimension_numbers<[1], [0], [0], [1], [0, 0, 1, 1], [], []>} : vector<16x32xbf16>, vector<32x32xbf16>, vector<16x32xf32> -> vector<16x32xf32>
    %45 = arith.truncf %44 : vector<16x32xf32> to vector<16x32xbf16>
    %c0_23 = arith.constant 0 : index
    %c0_24 = arith.constant 0 : index
    %46 = vector.load %arg7[%c0_23, %c0_24] : memref<64x32xbf16, #tpu.memory_space<vmem>>, vector<64x32xbf16>
    %47 = tpu.concatenate %42, %42, %42, %42 in 0 : vector<16x32xbf16>, vector<16x32xbf16>, vector<16x32xbf16>, vector<16x32xbf16> -> vector<64x32xbf16>
    %48 = arith.mulf %47, %46 : vector<64x32xbf16>
    %49 = tpu.concatenate %45, %45, %45, %45 in 0 : vector<16x32xbf16>, vector<16x32xbf16>, vector<16x32xbf16>, vector<16x32xbf16> -> vector<64x32xbf16>
    %50 = arith.mulf %49, %46 : vector<64x32xbf16>
    %cst_25 = arith.constant dense<0.000000e+00> : vector<16x64xf32>
    %51 = tpu.matmul %39, %48, %cst_25 {dimension_numbers = #tpu.dot_dimension_numbers<[1], [1], [0], [0], [0, 0, 1, 0], [], []>} : vector<16x32xbf16>, vector<64x32xbf16>, vector<16x64xf32> -> vector<16x64xf32>
    %c0_26 = arith.constant 0 : index
    %c0_27 = arith.constant 0 : index
    %52 = vector.load %arg8[%c0_26, %c0_27] : memref<16x64xf32, #tpu.memory_space<vmem>>, vector<16x64xf32>
    %53 = arith.addf %51, %52 : vector<16x64xf32>
    %cst_28 = arith.constant dense<0xFF800000> : vector<16xf32>
    %54 = vector.multi_reduction <maximumf>, %53, %cst_28 [1] : vector<16x64xf32> to vector<16xf32>
    %55 = vector.shape_cast %54 : vector<16xf32> to vector<16x1xf32>
    %56 = vector.broadcast %55 : vector<16x1xf32> to vector<16x64xf32>
    %57 = arith.subf %53, %56 : vector<16x64xf32>
    %58 = math.exp %57 : vector<16x64xf32>
    %59 = arith.truncf %58 : vector<16x64xf32> to vector<16x64xbf16>
    %cst_29 = arith.constant dense<0.000000e+00> : vector<16x32xf32>
    %60 = tpu.matmul %59, %50, %cst_29 {dimension_numbers = #tpu.dot_dimension_numbers<[1], [0], [0], [1], [0, 0, 1, 1], [], []>} : vector<16x64xbf16>, vector<64x32xbf16>, vector<16x32xf32> -> vector<16x32xf32>
    %cst_30 = arith.constant dense<0.000000e+00> : vector<16x32xf32>
    %61 = tpu.matmul %59, %46, %cst_30 {dimension_numbers = #tpu.dot_dimension_numbers<[1], [0], [0], [1], [0, 0, 1, 1], [], []>} : vector<16x64xbf16>, vector<64x32xbf16>, vector<16x32xf32> -> vector<16x32xf32>
    %62 = tpu.reciprocal %61 {approx = true} : vector<16x32xf32> -> vector<16x32xf32>
    %63 = arith.mulf %60, %62 : vector<16x32xf32>
    %64 = arith.truncf %63 : vector<16x32xf32> to vector<16x32xbf16>
    %c0_31 = arith.constant 0 : index
    %c0_32 = arith.constant 0 : index
    %65 = vector.load %arg6[%c0_31, %c0_32] : memref<32x32xbf16, #tpu.memory_space<vmem>>, vector<32x32xbf16>
    %cst_33 = arith.constant dense<0.000000e+00> : vector<16x32xf32>
    %66 = tpu.matmul %64, %65, %cst_33 {dimension_numbers = #tpu.dot_dimension_numbers<[1], [0], [0], [1], [0, 0, 1, 1], [], []>} : vector<16x32xbf16>, vector<32x32xbf16>, vector<16x32xf32> -> vector<16x32xf32>
    %67 = arith.addf %11, %66 : vector<16x32xf32>
    %cst_34 = arith.constant dense<0.000000e+00> : vector<16xf32>
    %68 = vector.multi_reduction <add>, %67, %cst_34 [1] : vector<16x32xf32> to vector<16xf32>
    %69 = vector.shape_cast %68 : vector<16xf32> to vector<16x1xf32>
    %cst_35 = arith.constant 3.200000e+01 : f32
    %70 = vector.broadcast %cst_35 : f32 to vector<16x1xf32>
    %71 = arith.divf %69, %70 : vector<16x1xf32>
    %72 = vector.broadcast %71 : vector<16x1xf32> to vector<16x32xf32>
    %73 = arith.subf %67, %72 : vector<16x32xf32>
    %74 = arith.mulf %73, %73 : vector<16x32xf32>
    %cst_36 = arith.constant dense<0.000000e+00> : vector<16xf32>
    %75 = vector.multi_reduction <add>, %74, %cst_36 [1] : vector<16x32xf32> to vector<16xf32>
    %76 = vector.shape_cast %75 : vector<16xf32> to vector<16x1xf32>
    %cst_37 = arith.constant 3.200000e+01 : f32
    %77 = vector.broadcast %cst_37 : f32 to vector<16x1xf32>
    %78 = arith.divf %76, %77 : vector<16x1xf32>
    %79 = vector.broadcast %71 : vector<16x1xf32> to vector<16x32xf32>
    %80 = arith.subf %67, %79 : vector<16x32xf32>
    %cst_38 = arith.constant 9.99999974E-6 : f32
    %81 = vector.broadcast %cst_38 : f32 to vector<16x1xf32>
    %82 = arith.addf %78, %81 : vector<16x1xf32>
    %83 = math.rsqrt %82 : vector<16x1xf32>
    %84 = vector.broadcast %83 : vector<16x1xf32> to vector<16x32xf32>
    %85 = arith.mulf %80, %84 : vector<16x32xf32>
    %c0_39 = arith.constant 0 : index
    %c0_40 = arith.constant 0 : index
    %86 = vector.load %arg11[%c0_39, %c0_40] : memref<1x32xf32, #tpu.memory_space<vmem>>, vector<1x32xf32>
    %87 = vector.broadcast %86 : vector<1x32xf32> to vector<16x32xf32>
    %88 = arith.mulf %85, %87 : vector<16x32xf32>
    %c0_41 = arith.constant 0 : index
    %c0_42 = arith.constant 0 : index
    %89 = vector.load %arg12[%c0_41, %c0_42] : memref<1x32xf32, #tpu.memory_space<vmem>>, vector<1x32xf32>
    %90 = vector.broadcast %89 : vector<1x32xf32> to vector<16x32xf32>
    %91 = arith.addf %88, %90 : vector<16x32xf32>
    %92 = arith.truncf %91 : vector<16x32xf32> to vector<16x32xbf16>
    %c0_43 = arith.constant 0 : index
    %c0_44 = arith.constant 0 : index
    %93 = vector.load %arg13[%c0_43, %c0_44] : memref<32x128xbf16, #tpu.memory_space<vmem>>, vector<32x128xbf16>
    %cst_45 = arith.constant dense<0.000000e+00> : vector<16x128xf32>
    %94 = tpu.matmul %92, %93, %cst_45 {dimension_numbers = #tpu.dot_dimension_numbers<[1], [0], [0], [1], [0, 0, 1, 1], [], []>} : vector<16x32xbf16>, vector<32x128xbf16>, vector<16x128xf32> -> vector<16x128xf32>
    %c0_46 = arith.constant 0 : index
    %c0_47 = arith.constant 0 : index
    %95 = vector.load %arg14[%c0_46, %c0_47] : memref<1x128xf32, #tpu.memory_space<vmem>>, vector<1x128xf32>
    %96 = vector.broadcast %95 : vector<1x128xf32> to vector<16x128xf32>
    %97 = arith.addf %94, %96 : vector<16x128xf32>
    %cst_48 = arith.constant 0.000000e+00 : f32
    %98 = vector.broadcast %cst_48 : f32 to vector<16x128xf32>
    %99 = arith.maximumf %97, %98 : vector<16x128xf32>
    %100 = arith.truncf %99 : vector<16x128xf32> to vector<16x128xbf16>
    %c0_49 = arith.constant 0 : index
    %c0_50 = arith.constant 0 : index
    %101 = vector.load %arg15[%c0_49, %c0_50] : memref<128x32xbf16, #tpu.memory_space<vmem>>, vector<128x32xbf16>
    %cst_51 = arith.constant dense<0.000000e+00> : vector<16x32xf32>
    %102 = tpu.matmul %100, %101, %cst_51 {dimension_numbers = #tpu.dot_dimension_numbers<[1], [0], [0], [1], [0, 0, 1, 1], [], []>} : vector<16x128xbf16>, vector<128x32xbf16>, vector<16x32xf32> -> vector<16x32xf32>
    %c0_52 = arith.constant 0 : index
    %c0_53 = arith.constant 0 : index
    %103 = vector.load %arg16[%c0_52, %c0_53] : memref<1x32xf32, #tpu.memory_space<vmem>>, vector<1x32xf32>
    %104 = vector.broadcast %103 : vector<1x32xf32> to vector<16x32xf32>
    %105 = arith.addf %102, %104 : vector<16x32xf32>
    %106 = arith.addf %67, %105 : vector<16x32xf32>
    %107 = arith.truncf %106 : vector<16x32xf32> to vector<16x32xbf16>
    %c0_54 = arith.constant 0 : index
    %c0_55 = arith.constant 0 : index
    %108 = vector.load %arg17[%c0_54, %c0_55] : memref<32x128xbf16, #tpu.memory_space<vmem>>, vector<32x128xbf16>
    %cst_56 = arith.constant dense<0.000000e+00> : vector<16x128xf32>
    %109 = tpu.matmul %107, %108, %cst_56 {dimension_numbers = #tpu.dot_dimension_numbers<[1], [0], [0], [1], [0, 0, 1, 1], [], []>} : vector<16x32xbf16>, vector<32x128xbf16>, vector<16x128xf32> -> vector<16x128xf32>
    %c0_57 = arith.constant 0 : index
    %c0_58 = arith.constant 0 : index
    %110 = vector.load %arg18[%c0_57, %c0_58] : memref<16x128xf32, #tpu.memory_space<vmem>>, vector<16x128xf32>
    tpu.vector_store %arg18[%c0_57, %c0_58], %109 {strides = array<i32>} : memref<16x128xf32, #tpu.memory_space<vmem>>, vector<16x128xf32>,
    return
  }
}

</mosaic_0001>

<llo_original>
// kernel: trigram_forward.1
$region0: #{trigram_forward.1}
  #allocation0 [shape = 'u32[]', space=smem, size = 0x4, offset = 0x4, fixed_abs, tag = 'smem constant byte address 0x4 - core index']
  #allocation1 [shape = 'u32[144,128]{1,0:T(1,128)}', space=vmem, size = 0x12000, scoped, tag = 'internal scratch']
  %s0 = inlined_call_operand.vmem [shape: s32[16,1], index: 0, kind: input, shape index: {}]
  %s1 = inlined_call_operand.vmem [shape: bf16[128,32], index: 1, kind: input, shape index: {}]
  %s2 = inlined_call_operand.vmem [shape: f32[8,32], index: 2, kind: input, shape index: {}]
  %s3 = inlined_call_operand.vmem [shape: bf16[32,32], index: 3, kind: input, shape index: {}]
  %s4 = inlined_call_operand.vmem [shape: bf16[32,32], index: 4, kind: input, shape index: {}]
  %s5 = inlined_call_operand.vmem [shape: bf16[32,32], index: 5, kind: input, shape index: {}]
  %s6 = inlined_call_operand.vmem [shape: bf16[32,32], index: 6, kind: input, shape index: {}]
  %s7 = inlined_call_operand.vmem [shape: bf16[64,32], index: 7, kind: input, shape index: {}]
  %s8 = inlined_call_operand.vmem [shape: f32[16,64], index: 8, kind: input, shape index: {}]
  %s9 = inlined_call_operand.vmem [shape: f32[1,32], index: 9, kind: input, shape index: {}]
  %s10 = inlined_call_operand.vmem [shape: f32[1,32], index: 10, kind: input, shape index: {}]
  %s11 = inlined_call_operand.vmem [shape: f32[1,32], index: 11, kind: input, shape index: {}]
  %s12 = inlined_call_operand.vmem [shape: f32[1,32], index: 12, kind: input, shape index: {}]
  %s13 = inlined_call_operand.vmem [shape: bf16[32,128], index: 13, kind: input, shape index: {}]
  %s14 = inlined_call_operand.vmem [shape: f32[1,128], index: 14, kind: input, shape index: {}]
  %s15 = inlined_call_operand.vmem [shape: bf16[128,32], index: 15, kind: input, shape index: {}]
  %s16 = inlined_call_operand.vmem [shape: f32[1,32], index: 16, kind: input, shape index: {}]
  %s17 = inlined_call_operand.vmem [shape: bf16[32,128], index: 17, kind: input, shape index: {}]
  %s18 = inlined_call_operand.hbm [shape: f32[16,128], index: 18, kind: output, shape index: {}]
  %s19 = sld [smem:[#allocation0]]
  $region82: #{trigram_forward.1} parent=0
    _
  %s21 = ssub.s32 1, %s19
  %s22 = scalar_select 0, %s21, %s19
  $region1: #{trigram_forward.1} parent=0
    #allocation2 [shape = 'u8[8192]{0}', space=vmem, size = 0x2000, scoped, tag = 'output window, operand 0, single buffered']
    #allocation3 [shape = 's32[1]{0}', space=sflag, size = 0x4, scoped, tag = 'scoped memory for trigram_forward.1']
    %23 = vsyncpa [#allocation3], 0
    // Predicated region
    $region2: #{trigram_forward.1} parent=1 // pred_check
      _
    $region3: #{trigram_forward.1} parent=1 // pred_check_branch
      %25 = sbr.rel (0) target = $region5
    $region4: #{trigram_forward.1} parent=1 // pred_region
      _
    $region5: #{trigram_forward.1} parent=1 // pred_fallthru
      _
    // Predicated region
    $region6: #{trigram_forward.1} parent=1 // pred_check
      _
    $region7: #{trigram_forward.1} parent=1 // pred_check_branch
      %27 = sbr.rel (0) target = $region9
    $region8: #{trigram_forward.1} parent=1 // pred_region
      _
    $region9: #{trigram_forward.1} parent=1 // pred_fallthru
      _
    // Predicated region
    $region10: #{trigram_forward.1} parent=1 // pred_check
      _
    $region11: #{trigram_forward.1} parent=1 // pred_check_branch
      %29 = sbr.rel (0) target = $region13
    $region12: #{trigram_forward.1} parent=1 // pred_region
      _
    $region13: #{trigram_forward.1} parent=1 // pred_fallthru
      _
    // Predicated region
    $region14: #{trigram_forward.1} parent=1 // pred_check
      _
    $region15: #{trigram_forward.1} parent=1 // pred_check_branch
      %31 = sbr.rel (0) target = $region17
    $region16: #{trigram_forward.1} parent=1 // pred_region
      _
    $region17: #{trigram_forward.1} parent=1 // pred_fallthru
      _
    // Predicated region
    $region18: #{trigram_forward.1} parent=1 // pred_check
      _
    $region19: #{trigram_forward.1} parent=1 // pred_check_branch
      %33 = sbr.rel (0) target = $region21
    $region20: #{trigram_forward.1} parent=1 // pred_region
      _
    $region21: #{trigram_forward.1} parent=1 // pred_fallthru
      _
    // Predicated region
    $region22: #{trigram_forward.1} parent=1 // pred_check
      _
    $region23: #{trigram_forward.1} parent=1 // pred_check_branch
      %35 = sbr.rel (0) target = $region25
    $region24: #{trigram_forward.1} parent=1 // pred_region
      _
    $region25: #{trigram_forward.1} parent=1 // pred_fallthru
      _
    // Predicated region
    $region26: #{trigram_forward.1} parent=1 // pred_check
      _
    $region27: #{trigram_forward.1} parent=1 // pred_check_branch
      %37 = sbr.rel (0) target = $region29
    $region28: #{trigram_forward.1} parent=1 // pred_region
      _
    $region29: #{trigram_forward.1} parent=1 // pred_fallthru
      _
    // Predicated region
    $region30: #{trigram_forward.1} parent=1 // pred_check
      _
    $region31: #{trigram_forward.1} parent=1 // pred_check_branch
      %39 = sbr.rel (0) target = $region33
    $region32: #{trigram_forward.1} parent=1 // pred_region
      _
    $region33: #{trigram_forward.1} parent=1 // pred_fallthru
      _
    // Predicated region
    $region34: #{trigram_forward.1} parent=1 // pred_check
      _
    $region35: #{trigram_forward.1} parent=1 // pred_check_branch
      %41 = sbr.rel (0) target = $region37
    $region36: #{trigram_forward.1} parent=1 // pred_region
      _
    $region37: #{trigram_forward.1} parent=1 // pred_fallthru
      _
    // Predicated region
    $region38: #{trigram_forward.1} parent=1 // pred_check
      _
    $region39: #{trigram_forward.1} parent=1 // pred_check_branch
      %43 = sbr.rel (0) target = $region41
    $region40: #{trigram_forward.1} parent=1 // pred_region
      _
    $region41: #{trigram_forward.1} parent=1 // pred_fallthru
      _
    // Predicated region
    $region42: #{trigram_forward.1} parent=1 // pred_check
      _
    $region43: #{trigram_forward.1} parent=1 // pred_check_branch
      %45 = sbr.rel (0) target = $region45
    $region44: #{trigram_forward.1} parent=1 // pred_region
      _
    $region45: #{trigram_forward.1} parent=1 // pred_fallthru
      _
    // Predicated region
    $region46: #{trigram_forward.1} parent=1 // pred_check
      _
    $region47: #{trigram_forward.1} parent=1 // pred_check_branch
      %47 = sbr.rel (0) target = $region49
    $region48: #{trigram_forward.1} parent=1 // pred_region
      _
    $region49: #{trigram_forward.1} parent=1 // pred_fallthru
      _
    // Predicated region
    $region50: #{trigram_forward.1} parent=1 // pred_check
      _
    $region51: #{trigram_forward.1} parent=1 // pred_check_branch
      %49 = sbr.rel (0) target = $region53
    $region52: #{trigram_forward.1} parent=1 // pred_region
      _
    $region53: #{trigram_forward.1} parent=1 // pred_fallthru
      _
    // Predicated region
    $region54: #{trigram_forward.1} parent=1 // pred_check
      _
    $region55: #{trigram_forward.1} parent=1 // pred_check_branch
      %51 = sbr.rel (0) target = $region57
    $region56: #{trigram_forward.1} parent=1 // pred_region
      _
    $region57: #{trigram_forward.1} parent=1 // pred_fallthru
      _
    // Predicated region
    $region58: #{trigram_forward.1} parent=1 // pred_check
      _
    $region59: #{trigram_forward.1} parent=1 // pred_check_branch
      %53 = sbr.rel (0) target = $region61
    $region60: #{trigram_forward.1} parent=1 // pred_region
      _
    $region61: #{trigram_forward.1} parent=1 // pred_fallthru
      _
    // Predicated region
    $region62: #{trigram_forward.1} parent=1 // pred_check
      _
    $region63: #{trigram_forward.1} parent=1 // pred_check_branch
      %55 = sbr.rel (0) target = $region65
    $region64: #{trigram_forward.1} parent=1 // pred_region
      _
    $region65: #{trigram_forward.1} parent=1 // pred_fallthru
      _
    // Predicated region
    $region66: #{trigram_forward.1} parent=1 // pred_check
      _
    $region67: #{trigram_forward.1} parent=1 // pred_check_branch
      %57 = sbr.rel (0) target = $region69
    $region68: #{trigram_forward.1} parent=1 // pred_region
      _
    $region69: #{trigram_forward.1} parent=1 // pred_fallthru
      _
    // Predicated region
    $region70: #{trigram_forward.1} parent=1 // pred_check
      _
    $region71: #{trigram_forward.1} parent=1 // pred_check_branch
      %59 = sbr.rel (0) target = $region73
    $region72: #{trigram_forward.1} parent=1 // pred_region
      _
    $region73: #{trigram_forward.1} parent=1 // pred_fallthru
      _
    %v61 = vld [vmem:[%s0] sm:$0xff]
    %v62 = vld [vmem:[%s0 + $0x8] sm:$0xff]
    %v63 = vlaneseq
    %v64 = vand.u32 %v63, 127
    %65 = vset.pattern.permute.xlu0 0
    %66 = vperm.xlu0 %65, %v61
    %v67 = vpop.permute.xlu0 %66
    %68 = vset.pattern.permute.xlu0 0
    %69 = vperm.xlu0 %68, %v62
    %v70 = vpop.permute.xlu0 %69
    %vm71 = vcmp.eq.s32.totalorder %v64, %v67
    %vm72 = vcmp.eq.s32.totalorder %v64, %v70
    %v73 = vsel %vm71, 1, 0
    %v74 = vsel %vm72, 1, 0
    %v75 = vcvt.s32.f32 %v73
    %v76 = vcvt.s32.f32 %v74
    %v77 = vpack.c.bf16 %v76, %v75
    %v78 = vld [vmem:[%s1] sm:$0xf]
    %v79 = vld [vmem:[%s1 + $0x4] sm:$0xf]
    %v80 = vld [vmem:[%s1 + $0x8] sm:$0xf]
    %v81 = vld [vmem:[%s1 + $0xc] sm:$0xf]
    %v82 = vld [vmem:[%s1 + $0x10] sm:$0xf]
    %v83 = vld [vmem:[%s1 + $0x14] sm:$0xf]
    %v84 = vld [vmem:[%s1 + $0x18] sm:$0xf]
    %v85 = vld [vmem:[%s1 + $0x1c] sm:$0xf]
    %v86 = vld [vmem:[%s1 + $0x20] sm:$0xf]
    %v87 = vld [vmem:[%s1 + $0x24] sm:$0xf]
    %v88 = vld [vmem:[%s1 + $0x28] sm:$0xf]
    %v89 = vld [vmem:[%s1 + $0x2c] sm:$0xf]
    %v90 = vld [vmem:[%s1 + $0x30] sm:$0xf]
    %v91 = vld [vmem:[%s1 + $0x34] sm:$0xf]
    %v92 = vld [vmem:[%s1 + $0x38] sm:$0xf]
    %v93 = vld [vmem:[%s1 + $0x3c] sm:$0xf]
    %v94 = vld [vmem:[%s2] sm:$0xff]
    %v111 = vunpack.c.l.b16 %v78
    %v112 = vunpack.c.l.b16 %v79
    %v113 = vunpack.c.l.b16 %v80
    %v114 = vunpack.c.l.b16 %v81
    %v115 = vunpack.c.l.b16 %v82
    %v116 = vunpack.c.l.b16 %v83
    %v117 = vunpack.c.l.b16 %v84
    %v118 = vunpack.c.l.b16 %v85
    %v119 = vunpack.c.l.b16 %v86
    %v120 = vunpack.c.l.b16 %v87
    %v121 = vunpack.c.l.b16 %v88
    %v122 = vunpack.c.l.b16 %v89
    %v123 = vunpack.c.l.b16 %v90
    %v124 = vunpack.c.l.b16 %v91
    %v125 = vunpack.c.l.b16 %v92
    %v126 = vunpack.c.l.b16 %v93
    %v127 = vpack.c.b16 %v112, %v111
    %v128 = vpack.c.b16 %v114, %v113
    %v129 = vpack.c.b16 %v116, %v115
    %v130 = vpack.c.b16 %v118, %v117
    %v131 = vpack.c.b16 %v120, %v119
    %v132 = vpack.c.b16 %v122, %v121
    %v133 = vpack.c.b16 %v124, %v123
    %v134 = vpack.c.b16 %v126, %v125
    %143 = vmatprep.subr.bf16.mxu0 0
    %144 = vmatpush1.bf16.msra.mxu0 %v127
    %145 = vmatprep.subr.bf16.mxu0 0
    %146 = vmatpush1.bf16.msra.mxu0 %v128
    %147 = vmatprep.subr.bf16.mxu0 0
    %148 = vmatpush1.bf16.msra.mxu0 %v129
    %149 = vmatprep.subr.bf16.mxu0 0
    %150 = vmatpush1.bf16.msra.mxu0 %v130
    %151 = vmatprep.subr.bf16.mxu0 0
    %152 = vmatpush1.bf16.msra.mxu0 %v131
    %153 = vmatprep.subr.bf16.mxu0 0
    %154 = vmatpush1.bf16.msra.mxu0 %v132
    %155 = vmatprep.subr.bf16.mxu0 0
    %156 = vmatpush1.bf16.msra.mxu0 %v133
    %157 = vmatprep.subr.bf16.mxu0 0
    %158 = vmatpush1.bf16.msra.mxu0 %v134
    %159 = vmatprep.subr.bf16.mxu0 0
    %160 = vmatpush1.bf16.msra.mxu0 0
    %161 = vmatprep.subr.bf16.mxu0 0
    %162 = vmatpush1.bf16.msra.mxu0 0
    %163 = vmatprep.subr.bf16.mxu0 0
    %164 = vmatpush1.bf16.msra.mxu0 0
    %165 = vmatprep.subr.bf16.mxu0 0
    %166 = vmatpush1.bf16.msra.mxu0 0
    %167 = vmatprep.subr.bf16.mxu0 0
    %168 = vmatpush1.bf16.msra.mxu0 0
    %169 = vmatprep.subr.bf16.mxu0 0
    %170 = vmatpush1.bf16.msra.mxu0 0
    %171 = vmatprep.subr.bf16.mxu0 0
    %172 = vmatpush1.bf16.msra.mxu0 0
    %173 = vmatprep.subr.bf16.mxu0 0
    %174 = vmatpush1.bf16.msra.mxu0 0
    %175 = vmatprep.mubr.bf16.mxu0 0
    %176 = vmatmul.mubr.bf16.gmra.mrb[0].mxu0 %v77
    %v177 = vpop.f32.mrb[0].mxu0
    %v178 = vadd.f32 %v94, %v177
    %v179 = vpop.f32.mrb[0].mxu0
    %v180 = vpop.f32.mrb[0].mxu0
    %v181 = vadd.f32 %v94, %v180
    %v182 = vpop.f32.mrb[0].mxu0
    %183 = vdwg.mxu0
    %vm184 = vcmask 261120
    %v185 = vsel %vm184, %v178, 0.0
    %186 = vadd.xlane.f32.xlu0 %v185
    %v187 = vpop.xlane.xlu0 %186
    %v188 = vsel %vm184, %v181, 0.0
    %189 = vadd.xlane.f32.xlu0 %v188
    %v190 = vpop.xlane.xlu0 %189
    %v191 = vrcp.pop 32.0
    %v192 = vmul.f32 %v187, %v191
    %v193 = vmul.f32 %v190, %v191
    %v194 = vsub.f32 %v178, %v192
    %v195 = vsub.f32 %v181, %v193
    %v196 = vmul.f32 %v194, %v194
    %v197 = vmul.f32 %v195, %v195
    %v198 = vsel %vm184, %v196, 0.0
    %199 = vadd.xlane.f32.xlu0 %v198
    %v200 = vpop.xlane.xlu0 %199
    %v201 = vsel %vm184, %v197, 0.0
    %202 = vadd.xlane.f32.xlu0 %v201
    %v203 = vpop.xlane.xlu0 %202
    %v204 = vmul.f32 %v200, %v191
    %v205 = vmul.f32 %v203, %v191
    %v206 = vadd.f32 %v204, 1e-05
    %v207 = vadd.f32 %v205, 1e-05
    %v208 = vrsqrt.pop %v206
    %v209 = vrsqrt.pop %v207
    %v210 = vmul.f32 %v194, %v208
    %v211 = vmul.f32 %v195, %v209
    %v212 = vld [vmem:[%s9] sm:$0x1]
    %v214 = vlaneseq
    %v215 = vshrl.u32 %v214, 7
    %v216 = vsub.s32 0, %v215
    %v217 = vrot.slane %v212, %v216
    %v219 = vmul.f32 %v210, %v217
    %v220 = vmul.f32 %v211, %v217
    %v221 = vld [vmem:[%s10] sm:$0x1]
    %v223 = vlaneseq
    %v224 = vshrl.u32 %v223, 7
    %v225 = vsub.s32 0, %v224
    %v226 = vrot.slane %v221, %v225
    %v228 = vadd.f32 %v219, %v226
    %v229 = vadd.f32 %v220, %v226
    %v230 = vpack.c.bf16 %v229, %v228
    %v231 = vld [vmem:[%s3] sm:$0xf]
    %v232 = vld [vmem:[%s3 + $0x4] sm:$0xf]
    %v233 = vld [vmem:[%s3 + $0x8] sm:$0xf]
    %v234 = vld [vmem:[%s3 + $0xc] sm:$0xf]
    %v239 = vunpack.c.l.b16 %v231
    %v240 = vunpack.c.l.b16 %v232
    %v241 = vunpack.c.l.b16 %v233
    %v242 = vunpack.c.l.b16 %v234
    %v243 = vpack.c.b16 %v240, %v239
    %v244 = vpack.c.b16 %v242, %v241
    %v248 = vsel %vm184, %v230, 0
    %250 = vmatprep.subr.bf16.mxu0 0
    %251 = vmatpush1.bf16.msra.mxu0 %v243
    %252 = vmatprep.subr.bf16.mxu0 0
    %253 = vmatpush1.bf16.msra.mxu0 %v244
    %254 = vmatprep.subr.bf16.mxu0 0
    %255 = vmatpush1.bf16.msra.mxu0 0
    %256 = vmatprep.subr.bf16.mxu0 0
    %257 = vmatpush1.bf16.msra.mxu0 0
    %258 = vmatprep.subr.bf16.mxu0 0
    %259 = vmatpush1.bf16.msra.mxu0 0
    %260 = vmatprep.subr.bf16.mxu0 0
    %261 = vmatpush1.bf16.msra.mxu0 0
    %262 = vmatprep.subr.bf16.mxu0 0
    %263 = vmatpush1.bf16.msra.mxu0 0
    %264 = vmatprep.subr.bf16.mxu0 0
    %265 = vmatpush1.bf16.msra.mxu0 0
    %266 = vmatprep.subr.bf16.mxu0 0
    %267 = vmatpush1.bf16.msra.mxu0 0
    %268 = vmatprep.subr.bf16.mxu0 0
    %269 = vmatpush1.bf16.msra.mxu0 0
    %270 = vmatprep.subr.bf16.mxu0 0
    %271 = vmatpush1.bf16.msra.mxu0 0
    %272 = vmatprep.subr.bf16.mxu0 0
    %273 = vmatpush1.bf16.msra.mxu0 0
    %274 = vmatprep.subr.bf16.mxu0 0
    %275 = vmatpush1.bf16.msra.mxu0 0
    %276 = vmatprep.subr.bf16.mxu0 0
    %277 = vmatpush1.bf16.msra.mxu0 0
    %278 = vmatprep.subr.bf16.mxu0 0
    %279 = vmatpush1.bf16.msra.mxu0 0
    %280 = vmatprep.subr.bf16.mxu0 0
    %281 = vmatpush1.bf16.msra.mxu0 0
    %282 = vmatprep.mubr.bf16.mxu0 0
    %283 = vmatmul.mubr.bf16.gmra.mrb[0].mxu0 %v248
    %v284 = vpop.f32.mrb[0].mxu0
    %v285 = vadd.f32 0.0, %v284
    %v286 = vpop.f32.mrb[0].mxu0
    %v287 = vpop.f32.mrb[0].mxu0
    %v288 = vadd.f32 0.0, %v287
    %v289 = vpop.f32.mrb[0].mxu0
    %290 = vdwg.mxu0
    %v291 = vpack.c.bf16 %v288, %v285
    %v292 = vld [vmem:[%s4] sm:$0xf]
    %v293 = vld [vmem:[%s4 + $0x4] sm:$0xf]
    %v294 = vld [vmem:[%s4 + $0x8] sm:$0xf]
    %v295 = vld [vmem:[%s4 + $0xc] sm:$0xf]
    %v300 = vunpack.c.l.b16 %v292
    %v301 = vunpack.c.l.b16 %v293
    %v302 = vunpack.c.l.b16 %v294
    %v303 = vunpack.c.l.b16 %v295
    %v304 = vpack.c.b16 %v301, %v300
    %v305 = vpack.c.b16 %v303, %v302
    %308 = vmatprep.subr.bf16.mxu0 0
    %309 = vmatpush1.bf16.msra.mxu0 %v304
    %310 = vmatprep.subr.bf16.mxu0 0
    %311 = vmatpush1.bf16.msra.mxu0 %v305
    %312 = vmatprep.subr.bf16.mxu0 0
    %313 = vmatpush1.bf16.msra.mxu0 0
    %314 = vmatprep.subr.bf16.mxu0 0
    %315 = vmatpush1.bf16.msra.mxu0 0
    %316 = vmatprep.subr.bf16.mxu0 0
    %317 = vmatpush1.bf16.msra.mxu0 0
    %318 = vmatprep.subr.bf16.mxu0 0
    %319 = vmatpush1.bf16.msra.mxu0 0
    %320 = vmatprep.subr.bf16.mxu0 0
    %321 = vmatpush1.bf16.msra.mxu0 0
    %322 = vmatprep.subr.bf16.mxu0 0
    %323 = vmatpush1.bf16.msra.mxu0 0
    %324 = vmatprep.subr.bf16.mxu0 0
    %325 = vmatpush1.bf16.msra.mxu0 0
    %326 = vmatprep.subr.bf16.mxu0 0
    %327 = vmatpush1.bf16.msra.mxu0 0
    %328 = vmatprep.subr.bf16.mxu0 0
    %329 = vmatpush1.bf16.msra.mxu0 0
    %330 = vmatprep.subr.bf16.mxu0 0
    %331 = vmatpush1.bf16.msra.mxu0 0
    %332 = vmatprep.subr.bf16.mxu0 0
    %333 = vmatpush1.bf16.msra.mxu0 0
    %334 = vmatprep.subr.bf16.mxu0 0
    %335 = vmatpush1.bf16.msra.mxu0 0
    %336 = vmatprep.subr.bf16.mxu0 0
    %337 = vmatpush1.bf16.msra.mxu0 0
    %338 = vmatprep.subr.bf16.mxu0 0
    %339 = vmatpush1.bf16.msra.mxu0 0
    %340 = vmatprep.mubr.bf16.mxu0 0
    %341 = vmatmul.mubr.bf16.gmra.mrb[0].mxu0 %v248
    %v342 = vpop.f32.mrb[0].mxu0
    %v343 = vadd.f32 0.0, %v342
    %v344 = vpop.f32.mrb[0].mxu0
    %v345 = vpop.f32.mrb[0].mxu0
    %v346 = vadd.f32 0.0, %v345
    %v347 = vpop.f32.mrb[0].mxu0
    %348 = vdwg.mxu0
    %v349 = vpack.c.bf16 %v346, %v343
    %v350 = vld [vmem:[%s5] sm:$0xf]
    %v351 = vld [vmem:[%s5 + $0x4] sm:$0xf]
    %v352 = vld [vmem:[%s5 + $0x8] sm:$0xf]
    %v353 = vld [vmem:[%s5 + $0xc] sm:$0xf]
    %v358 = vunpack.c.l.b16 %v350
    %v359 = vunpack.c.l.b16 %v351
    %v360 = vunpack.c.l.b16 %v352
    %v361 = vunpack.c.l.b16 %v353
    %v362 = vpack.c.b16 %v359, %v358
    %v363 = vpack.c.b16 %v361, %v360
    %366 = vmatprep.subr.bf16.mxu0 0
    %367 = vmatpush1.bf16.msra.mxu0 %v362
    %368 = vmatprep.subr.bf16.mxu0 0
    %369 = vmatpush1.bf16.msra.mxu0 %v363
    %370 = vmatprep.subr.bf16.mxu0 0
    %371 = vmatpush1.bf16.msra.mxu0 0
    %372 = vmatprep.subr.bf16.mxu0 0
    %373 = vmatpush1.bf16.msra.mxu0 0
    %374 = vmatprep.subr.bf16.mxu0 0
    %375 = vmatpush1.bf16.msra.mxu0 0
    %376 = vmatprep.subr.bf16.mxu0 0
    %377 = vmatpush1.bf16.msra.mxu0 0
    %378 = vmatprep.subr.bf16.mxu0 0
    %379 = vmatpush1.bf16.msra.mxu0 0
    %380 = vmatprep.subr.bf16.mxu0 0
    %381 = vmatpush1.bf16.msra.mxu0 0
    %382 = vmatprep.subr.bf16.mxu0 0
    %383 = vmatpush1.bf16.msra.mxu0 0
    %384 = vmatprep.subr.bf16.mxu0 0
    %385 = vmatpush1.bf16.msra.mxu0 0
    %386 = vmatprep.subr.bf16.mxu0 0
    %387 = vmatpush1.bf16.msra.mxu0 0
    %388 = vmatprep.subr.bf16.mxu0 0
    %389 = vmatpush1.bf16.msra.mxu0 0
    %390 = vmatprep.subr.bf16.mxu0 0
    %391 = vmatpush1.bf16.msra.mxu0 0
    %392 = vmatprep.subr.bf16.mxu0 0
    %393 = vmatpush1.bf16.msra.mxu0 0
    %394 = vmatprep.subr.bf16.mxu0 0
    %395 = vmatpush1.bf16.msra.mxu0 0
    %396 = vmatprep.subr.bf16.mxu0 0
    %397 = vmatpush1.bf16.msra.mxu0 0
    %398 = vmatprep.mubr.bf16.mxu0 0
    %399 = vmatmul.mubr.bf16.gmra.mrb[0].mxu0 %v248
    %v400 = vpop.f32.mrb[0].mxu0
    %v401 = vadd.f32 0.0, %v400
    %v402 = vpop.f32.mrb[0].mxu0
    %v403 = vpop.f32.mrb[0].mxu0
    %v404 = vadd.f32 0.0, %v403
    %v405 = vpop.f32.mrb[0].mxu0
    %406 = vdwg.mxu0
    %v407 = vpack.c.bf16 %v404, %v401
    %v408 = vld [vmem:[%s7] sm:$0xf]
    %v409 = vld [vmem:[%s7 + $0x4] sm:$0xf]
    %v410 = vld [vmem:[%s7 + $0x8] sm:$0xf]
    %v411 = vld [vmem:[%s7 + $0xc] sm:$0xf]
    %v412 = vld [vmem:[%s7 + $0x10] sm:$0xf]
    %v413 = vld [vmem:[%s7 + $0x14] sm:$0xf]
    %v414 = vld [vmem:[%s7 + $0x18] sm:$0xf]
    %v415 = vld [vmem:[%s7 + $0x1c] sm:$0xf]
    %v424 = vunpack.c.l.b16 %v408
    %v425 = vunpack.c.l.b16 %v409
    %v426 = vunpack.c.l.b16 %v410
    %v427 = vunpack.c.l.b16 %v411
    %v428 = vunpack.c.l.b16 %v412
    %v429 = vunpack.c.l.b16 %v413
    %v430 = vunpack.c.l.b16 %v414
    %v431 = vunpack.c.l.b16 %v415
    %v432 = vpack.c.b16 %v425, %v424
    %v433 = vpack.c.b16 %v427, %v426
    %v434 = vpack.c.b16 %v429, %v428
    %v435 = vpack.c.b16 %v431, %v430
    %v440 = vmul.bf16 %v349, %v432
    %v441 = vmul.bf16 %v349, %v433
    %v442 = vmul.bf16 %v349, %v434
    %v443 = vmul.bf16 %v349, %v435
    %v444 = vmul.bf16 %v407, %v432
    %v445 = vmul.bf16 %v407, %v433
    %v446 = vmul.bf16 %v407, %v434
    %v447 = vmul.bf16 %v407, %v435
    %v448 = vld [vmem:[%s8] sm:$0xff]
    %v449 = vld [vmem:[%s8 + $0x8] sm:$0xff]
    %v451 = vsel %vm184, %v291, 0
    %v454 = vsel %vm184, %v440, 0
    %v457 = vsel %vm184, %v441, 0
    %v460 = vsel %vm184, %v442, 0
    %v463 = vsel %vm184, %v443, 0
    %465 = vmatprep.subr.bf16.mxu0 0
    %466 = vmatpush1.bf16.xpose.msra.mxu0 %v454
    %467 = vmatprep.subr.bf16.mxu0 0
    %468 = vmatpush1.bf16.xpose.msra.mxu0 %v457
    %469 = vmatprep.subr.bf16.mxu0 0
    %470 = vmatpush1.bf16.xpose.msra.mxu0 %v460
    %471 = vmatprep.subr.bf16.mxu0 0
    %472 = vmatpush1.bf16.xpose.msra.mxu0 %v463
    %473 = vmatprep.subr.bf16.mxu0 0
    %474 = vmatpush1.bf16.xpose.msra.mxu0 0
    %475 = vmatprep.subr.bf16.mxu0 0
    %476 = vmatpush1.bf16.xpose.msra.mxu0 0
    %477 = vmatprep.subr.bf16.mxu0 0
    %478 = vmatpush1.bf16.xpose.msra.mxu0 0
    %479 = vmatprep.subr.bf16.mxu0 0
    %480 = vmatpush1.bf16.xpose.msra.mxu0 0
    %481 = vmatprep.subr.bf16.mxu0 0
    %482 = vmatpush1.bf16.xpose.msra.mxu0 0
    %483 = vmatprep.subr.bf16.mxu0 0
    %484 = vmatpush1.bf16.xpose.msra.mxu0 0
    %485 = vmatprep.subr.bf16.mxu0 0
    %486 = vmatpush1.bf16.xpose.msra.mxu0 0
    %487 = vmatprep.subr.bf16.mxu0 0
    %488 = vmatpush1.bf16.xpose.msra.mxu0 0
    %489 = vmatprep.subr.bf16.mxu0 0
    %490 = vmatpush1.bf16.xpose.msra.mxu0 0
    %491 = vmatprep.subr.bf16.mxu0 0
    %492 = vmatpush1.bf16.xpose.msra.mxu0 0
    %493 = vmatprep.subr.bf16.mxu0 0
    %494 = vmatpush1.bf16.xpose.msra.mxu0 0
    %495 = vmatprep.subr.bf16.mxu0 0
    %496 = vmatpush1.bf16.xpose.msra.mxu0 0
    %497 = vmatprep.mubr.bf16.mxu0 0
    %498 = vmatmul.mubr.bf16.gmra.mrb[0].mxu0 %v451
    %v499 = vpop.f32.mrb[0].mxu0
    %v500 = vadd.f32 %v448, %v499
    %v501 = vpop.f32.mrb[0].mxu0
    %v502 = vpop.f32.mrb[0].mxu0
    %v503 = vadd.f32 %v449, %v502
    %v504 = vpop.f32.mrb[0].mxu0
    %505 = vdwg.mxu0
    %vm506 = vcmask 523264
    %v507 = vsel %vm506, %v500, -inf
    %508 = vmax.xlane.f32.xlu0 %v507
    %v509 = vpop.xlane.xlu0 %508
    %v510 = vsel %vm506, %v503, -inf
    %511 = vmax.xlane.f32.xlu0 %v510
    %v512 = vpop.xlane.xlu0 %511
    %v513 = vsub.f32 %v500, %v509
    %v514 = vsub.f32 %v503, %v512
    %v515 = vmul.f32 %v513, 1.442695
    %v516 = vpow.pop %v515
    %v517 = vmul.f32 %v514, 1.442695
    %v518 = vpow.pop %v517
    %v519 = vpack.c.bf16 %v518, %v516
    %v521 = vsel %vm506, %v519, 0
    %523 = vmatprep.subr.bf16.mxu0 0
    %524 = vmatpush1.bf16.msra.mxu0 %v444
    %525 = vmatprep.subr.bf16.mxu0 0
    %526 = vmatpush1.bf16.msra.mxu0 %v445
    %527 = vmatprep.subr.bf16.mxu0 0
    %528 = vmatpush1.bf16.msra.mxu0 %v446
    %529 = vmatprep.subr.bf16.mxu0 0
    %530 = vmatpush1.bf16.msra.mxu0 %v447
    %531 = vmatprep.subr.bf16.mxu0 0
    %532 = vmatpush1.bf16.msra.mxu0 0
    %533 = vmatprep.subr.bf16.mxu0 0
    %534 = vmatpush1.bf16.msra.mxu0 0
    %535 = vmatprep.subr.bf16.mxu0 0
    %536 = vmatpush1.bf16.msra.mxu0 0
    %537 = vmatprep.subr.bf16.mxu0 0
    %538 = vmatpush1.bf16.msra.mxu0 0
    %539 = vmatprep.subr.bf16.mxu0 0
    %540 = vmatpush1.bf16.msra.mxu0 0
    %541 = vmatprep.subr.bf16.mxu0 0
    %542 = vmatpush1.bf16.msra.mxu0 0
    %543 = vmatprep.subr.bf16.mxu0 0
    %544 = vmatpush1.bf16.msra.mxu0 0
    %545 = vmatprep.subr.bf16.mxu0 0
    %546 = vmatpush1.bf16.msra.mxu0 0
    %547 = vmatprep.subr.bf16.mxu0 0
    %548 = vmatpush1.bf16.msra.mxu0 0
    %549 = vmatprep.subr.bf16.mxu0 0
    %550 = vmatpush1.bf16.msra.mxu0 0
    %551 = vmatprep.subr.bf16.mxu0 0
    %552 = vmatpush1.bf16.msra.mxu0 0
    %553 = vmatprep.subr.bf16.mxu0 0
    %554 = vmatpush1.bf16.msra.mxu0 0
    %555 = vmatprep.mubr.bf16.mxu0 0
    %556 = vmatmul.mubr.bf16.gmra.mrb[0].mxu0 %v521
    %v557 = vpop.f32.mrb[0].mxu0
    %v558 = vadd.f32 0.0, %v557
    %v559 = vpop.f32.mrb[0].mxu0
    %v560 = vpop.f32.mrb[0].mxu0
    %v561 = vadd.f32 0.0, %v560
    %v562 = vpop.f32.mrb[0].mxu0
    %563 = vdwg.mxu0
    %564 = vmatprep.subr.bf16.mxu0 0
    %565 = vmatpush1.bf16.msra.mxu0 %v432
    %566 = vmatprep.subr.bf16.mxu0 0
    %567 = vmatpush1.bf16.msra.mxu0 %v433
    %568 = vmatprep.subr.bf16.mxu0 0
    %569 = vmatpush1.bf16.msra.mxu0 %v434
    %570 = vmatprep.subr.bf16.mxu0 0
    %571 = vmatpush1.bf16.msra.mxu0 %v435
    %572 = vmatprep.subr.bf16.mxu0 0
    %573 = vmatpush1.bf16.msra.mxu0 0
    %574 = vmatprep.subr.bf16.mxu0 0
    %575 = vmatpush1.bf16.msra.mxu0 0
    %576 = vmatprep.subr.bf16.mxu0 0
    %577 = vmatpush1.bf16.msra.mxu0 0
    %578 = vmatprep.subr.bf16.mxu0 0
    %579 = vmatpush1.bf16.msra.mxu0 0
    %580 = vmatprep.subr.bf16.mxu0 0
    %581 = vmatpush1.bf16.msra.mxu0 0
    %582 = vmatprep.subr.bf16.mxu0 0
    %583 = vmatpush1.bf16.msra.mxu0 0
    %584 = vmatprep.subr.bf16.mxu0 0
    %585 = vmatpush1.bf16.msra.mxu0 0
    %586 = vmatprep.subr.bf16.mxu0 0
    %587 = vmatpush1.bf16.msra.mxu0 0
    %588 = vmatprep.subr.bf16.mxu0 0
    %589 = vmatpush1.bf16.msra.mxu0 0
    %590 = vmatprep.subr.bf16.mxu0 0
    %591 = vmatpush1.bf16.msra.mxu0 0
    %592 = vmatprep.subr.bf16.mxu0 0
    %593 = vmatpush1.bf16.msra.mxu0 0
    %594 = vmatprep.subr.bf16.mxu0 0
    %595 = vmatpush1.bf16.msra.mxu0 0
    %596 = vmatprep.mubr.bf16.mxu0 0
    %597 = vmatmul.mubr.bf16.gmra.mrb[0].mxu0 %v521
    %v598 = vpop.f32.mrb[0].mxu0
    %v599 = vadd.f32 0.0, %v598
    %v600 = vpop.f32.mrb[0].mxu0
    %v601 = vpop.f32.mrb[0].mxu0
    %v602 = vadd.f32 0.0, %v601
    %v603 = vpop.f32.mrb[0].mxu0
    %604 = vdwg.mxu0
    %v605 = vrcp.pop %v599
    %v606 = vrcp.pop %v602
    %v607 = vmul.f32 %v558, %v605
    %v608 = vmul.f32 %v561, %v606
    %v609 = vpack.c.bf16 %v608, %v607
    %v610 = vld [vmem:[%s6] sm:$0xf]
    %v611 = vld [vmem:[%s6 + $0x4] sm:$0xf]
    %v612 = vld [vmem:[%s6 + $0x8] sm:$0xf]
    %v613 = vld [vmem:[%s6 + $0xc] sm:$0xf]
    %v618 = vunpack.c.l.b16 %v610
    %v619 = vunpack.c.l.b16 %v611
    %v620 = vunpack.c.l.b16 %v612
    %v621 = vunpack.c.l.b16 %v613
    %v622 = vpack.c.b16 %v619, %v618
    %v623 = vpack.c.b16 %v621, %v620
    %v627 = vsel %vm184, %v609, 0
    %629 = vmatprep.subr.bf16.mxu0 0
    %630 = vmatpush1.bf16.msra.mxu0 %v622
    %631 = vmatprep.subr.bf16.mxu0 0
    %632 = vmatpush1.bf16.msra.mxu0 %v623
    %633 = vmatprep.subr.bf16.mxu0 0
    %634 = vmatpush1.bf16.msra.mxu0 0
    %635 = vmatprep.subr.bf16.mxu0 0
    %636 = vmatpush1.bf16.msra.mxu0 0
    %637 = vmatprep.subr.bf16.mxu0 0
    %638 = vmatpush1.bf16.msra.mxu0 0
    %639 = vmatprep.subr.bf16.mxu0 0
    %640 = vmatpush1.bf16.msra.mxu0 0
    %641 = vmatprep.subr.bf16.mxu0 0
    %642 = vmatpush1.bf16.msra.mxu0 0
    %643 = vmatprep.subr.bf16.mxu0 0
    %644 = vmatpush1.bf16.msra.mxu0 0
    %645 = vmatprep.subr.bf16.mxu0 0
    %646 = vmatpush1.bf16.msra.mxu0 0
    %647 = vmatprep.subr.bf16.mxu0 0
    %648 = vmatpush1.bf16.msra.mxu0 0
    %649 = vmatprep.subr.bf16.mxu0 0
    %650 = vmatpush1.bf16.msra.mxu0 0
    %651 = vmatprep.subr.bf16.mxu0 0
    %652 = vmatpush1.bf16.msra.mxu0 0
    %653 = vmatprep.subr.bf16.mxu0 0
    %654 = vmatpush1.bf16.msra.mxu0 0
    %655 = vmatprep.subr.bf16.mxu0 0
    %656 = vmatpush1.bf16.msra.mxu0 0
    %657 = vmatprep.subr.bf16.mxu0 0
    %658 = vmatpush1.bf16.msra.mxu0 0
    %659 = vmatprep.subr.bf16.mxu0 0
    %660 = vmatpush1.bf16.msra.mxu0 0
    %661 = vmatprep.mubr.bf16.mxu0 0
    %662 = vmatmul.mubr.bf16.gmra.mrb[0].mxu0 %v627
    %v663 = vpop.f32.mrb[0].mxu0
    %v664 = vadd.f32 0.0, %v663
    %v665 = vpop.f32.mrb[0].mxu0
    %v666 = vpop.f32.mrb[0].mxu0
    %v667 = vadd.f32 0.0, %v666
    %v668 = vpop.f32.mrb[0].mxu0
    %669 = vdwg.mxu0
    %v670 = vadd.f32 %v178, %v664
    %v671 = vadd.f32 %v181, %v667
    %v672 = vsel %vm184, %v670, 0.0
    %673 = vadd.xlane.f32.xlu0 %v672
    %v674 = vpop.xlane.xlu0 %673
    %v675 = vsel %vm184, %v671, 0.0
    %676 = vadd.xlane.f32.xlu0 %v675
    %v677 = vpop.xlane.xlu0 %676
    %v678 = vmul.f32 %v674, %v191
    %v679 = vmul.f32 %v677, %v191
    %v680 = vsub.f32 %v670, %v678
    %v681 = vsub.f32 %v671, %v679
    %v682 = vmul.f32 %v680, %v680
    %v683 = vmul.f32 %v681, %v681
    %v684 = vsel %vm184, %v682, 0.0
    %685 = vadd.xlane.f32.xlu0 %v684
    %v686 = vpop.xlane.xlu0 %685
    %v687 = vsel %vm184, %v683, 0.0
    %688 = vadd.xlane.f32.xlu0 %v687
    %v689 = vpop.xlane.xlu0 %688
    %v690 = vmul.f32 %v686, %v191
    %v691 = vmul.f32 %v689, %v191
    %v692 = vadd.f32 %v690, 1e-05
    %v693 = vadd.f32 %v691, 1e-05
    %v694 = vrsqrt.pop %v692
    %v695 = vrsqrt.pop %v693
    %v696 = vmul.f32 %v680, %v694
    %v697 = vmul.f32 %v681, %v695
    %v698 = vld [vmem:[%s11] sm:$0x1]
    %v700 = vlaneseq
    %v701 = vshrl.u32 %v700, 7
    %v702 = vsub.s32 0, %v701
    %v703 = vrot.slane %v698, %v702
    %v705 = vmul.f32 %v696, %v703
    %v706 = vmul.f32 %v697, %v703
    %v707 = vld [vmem:[%s12] sm:$0x1]
    %v709 = vlaneseq
    %v710 = vshrl.u32 %v709, 7
    %v711 = vsub.s32 0, %v710
    %v712 = vrot.slane %v707, %v711
    %v714 = vadd.f32 %v705, %v712
    %v715 = vadd.f32 %v706, %v712
    %v716 = vpack.c.bf16 %v715, %v714
    %v717 = vld [vmem:[%s13] sm:$0xf]
    %v718 = vld [vmem:[%s13 + $0x4] sm:$0xf]
    %v719 = vld [vmem:[%s13 + $0x8] sm:$0xf]
    %v720 = vld [vmem:[%s13 + $0xc] sm:$0xf]
    %v721 = vld [vmem:[%s14] sm:$0x1]
    %v723 = vlaneseq
    %v724 = vshrl.u32 %v723, 7
    %v725 = vsub.s32 0, %v724
    %v726 = vrot.slane %v721, %v725
    %v732 = vunpack.c.l.b16 %v717
    %v733 = vunpack.c.l.b16 %v718
    %v734 = vunpack.c.l.b16 %v719
    %v735 = vunpack.c.l.b16 %v720
    %v736 = vpack.c.b16 %v733, %v732
    %v737 = vpack.c.b16 %v735, %v734
    %v741 = vsel %vm184, %v716, 0
    %743 = vmatprep.subr.bf16.mxu0 0
    %744 = vmatpush1.bf16.msra.mxu0 %v736
    %745 = vmatprep.subr.bf16.mxu0 0
    %746 = vmatpush1.bf16.msra.mxu0 %v737
    %747 = vmatprep.subr.bf16.mxu0 0
    %748 = vmatpush1.bf16.msra.mxu0 0
    %749 = vmatprep.subr.bf16.mxu0 0
    %750 = vmatpush1.bf16.msra.mxu0 0
    %751 = vmatprep.subr.bf16.mxu0 0
    %752 = vmatpush1.bf16.msra.mxu0 0
    %753 = vmatprep.subr.bf16.mxu0 0
    %754 = vmatpush1.bf16.msra.mxu0 0
    %755 = vmatprep.subr.bf16.mxu0 0
    %756 = vmatpush1.bf16.msra.mxu0 0
    %757 = vmatprep.subr.bf16.mxu0 0
    %758 = vmatpush1.bf16.msra.mxu0 0
    %759 = vmatprep.subr.bf16.mxu0 0
    %760 = vmatpush1.bf16.msra.mxu0 0
    %761 = vmatprep.subr.bf16.mxu0 0
    %762 = vmatpush1.bf16.msra.mxu0 0
    %763 = vmatprep.subr.bf16.mxu0 0
    %764 = vmatpush1.bf16.msra.mxu0 0
    %765 = vmatprep.subr.bf16.mxu0 0
    %766 = vmatpush1.bf16.msra.mxu0 0
    %767 = vmatprep.subr.bf16.mxu0 0
    %768 = vmatpush1.bf16.msra.mxu0 0
    %769 = vmatprep.subr.bf16.mxu0 0
    %770 = vmatpush1.bf16.msra.mxu0 0
    %771 = vmatprep.subr.bf16.mxu0 0
    %772 = vmatpush1.bf16.msra.mxu0 0
    %773 = vmatprep.subr.bf16.mxu0 0
    %774 = vmatpush1.bf16.msra.mxu0 0
    %775 = vmatprep.mubr.bf16.mxu0 0
    %776 = vmatmul.mubr.bf16.gmra.mrb[0].mxu0 %v741
    %v777 = vpop.f32.mrb[0].mxu0
    %v778 = vadd.f32 %v726, %v777
    %v779 = vpop.f32.mrb[0].mxu0
    %v780 = vpop.f32.mrb[0].mxu0
    %v781 = vadd.f32 %v726, %v780
    %v782 = vpop.f32.mrb[0].mxu0
    %783 = vdwg.mxu0
    %v784 = vmax.f32 %v778, 0.0
    %v785 = vmax.f32 %v781, 0.0
    %v786 = vpack.c.bf16 %v785, %v784
    %v787 = vld [vmem:[%s15] sm:$0xf]
    %v788 = vld [vmem:[%s15 + $0x4] sm:$0xf]
    %v789 = vld [vmem:[%s15 + $0x8] sm:$0xf]
    %v790 = vld [vmem:[%s15 + $0xc] sm:$0xf]
    %v791 = vld [vmem:[%s15 + $0x10] sm:$0xf]
    %v792 = vld [vmem:[%s15 + $0x14] sm:$0xf]
    %v793 = vld [vmem:[%s15 + $0x18] sm:$0xf]
    %v794 = vld [vmem:[%s15 + $0x1c] sm:$0xf]
    %v795 = vld [vmem:[%s15 + $0x20] sm:$0xf]
    %v796 = vld [vmem:[%s15 + $0x24] sm:$0xf]
    %v797 = vld [vmem:[%s15 + $0x28] sm:$0xf]
    %v798 = vld [vmem:[%s15 + $0x2c] sm:$0xf]
    %v799 = vld [vmem:[%s15 + $0x30] sm:$0xf]
    %v800 = vld [vmem:[%s15 + $0x34] sm:$0xf]
    %v801 = vld [vmem:[%s15 + $0x38] sm:$0xf]
    %v802 = vld [vmem:[%s15 + $0x3c] sm:$0xf]
    %v803 = vld [vmem:[%s16] sm:$0x1]
    %v805 = vlaneseq
    %v806 = vshrl.u32 %v805, 7
    %v807 = vsub.s32 0, %v806
    %v808 = vrot.slane %v803, %v807
    %v826 = vunpack.c.l.b16 %v787
    %v827 = vunpack.c.l.b16 %v788
    %v828 = vunpack.c.l.b16 %v789
    %v829 = vunpack.c.l.b16 %v790
    %v830 = vunpack.c.l.b16 %v791
    %v831 = vunpack.c.l.b16 %v792
    %v832 = vunpack.c.l.b16 %v793
    %v833 = vunpack.c.l.b16 %v794
    %v834 = vunpack.c.l.b16 %v795
    %v835 = vunpack.c.l.b16 %v796
    %v836 = vunpack.c.l.b16 %v797
    %v837 = vunpack.c.l.b16 %v798
    %v838 = vunpack.c.l.b16 %v799
    %v839 = vunpack.c.l.b16 %v800
    %v840 = vunpack.c.l.b16 %v801
    %v841 = vunpack.c.l.b16 %v802
    %v842 = vpack.c.b16 %v827, %v826
    %v843 = vpack.c.b16 %v829, %v828
    %v844 = vpack.c.b16 %v831, %v830
    %v845 = vpack.c.b16 %v833, %v832
    %v846 = vpack.c.b16 %v835, %v834
    %v847 = vpack.c.b16 %v837, %v836
    %v848 = vpack.c.b16 %v839, %v838
    %v849 = vpack.c.b16 %v841, %v840
    %858 = vmatprep.subr.bf16.mxu0 0
    %859 = vmatpush1.bf16.msra.mxu0 %v842
    %860 = vmatprep.subr.bf16.mxu0 0
    %861 = vmatpush1.bf16.msra.mxu0 %v843
    %862 = vmatprep.subr.bf16.mxu0 0
    %863 = vmatpush1.bf16.msra.mxu0 %v844
    %864 = vmatprep.subr.bf16.mxu0 0
    %865 = vmatpush1.bf16.msra.mxu0 %v845
    %866 = vmatprep.subr.bf16.mxu0 0
    %867 = vmatpush1.bf16.msra.mxu0 %v846
    %868 = vmatprep.subr.bf16.mxu0 0
    %869 = vmatpush1.bf16.msra.mxu0 %v847
    %870 = vmatprep.subr.bf16.mxu0 0
    %871 = vmatpush1.bf16.msra.mxu0 %v848
    %872 = vmatprep.subr.bf16.mxu0 0
    %873 = vmatpush1.bf16.msra.mxu0 %v849
    %874 = vmatprep.subr.bf16.mxu0 0
    %875 = vmatpush1.bf16.msra.mxu0 0
    %876 = vmatprep.subr.bf16.mxu0 0
    %877 = vmatpush1.bf16.msra.mxu0 0
    %878 = vmatprep.subr.bf16.mxu0 0
    %879 = vmatpush1.bf16.msra.mxu0 0
    %880 = vmatprep.subr.bf16.mxu0 0
    %881 = vmatpush1.bf16.msra.mxu0 0
    %882 = vmatprep.subr.bf16.mxu0 0
    %883 = vmatpush1.bf16.msra.mxu0 0
    %884 = vmatprep.subr.bf16.mxu0 0
    %885 = vmatpush1.bf16.msra.mxu0 0
    %886 = vmatprep.subr.bf16.mxu0 0
    %887 = vmatpush1.bf16.msra.mxu0 0
    %888 = vmatprep.subr.bf16.mxu0 0
    %889 = vmatpush1.bf16.msra.mxu0 0
    %890 = vmatprep.mubr.bf16.mxu0 0
    %891 = vmatmul.mubr.bf16.gmra.mrb[0].mxu0 %v786
    %v892 = vpop.f32.mrb[0].mxu0
    %v893 = vadd.f32 %v808, %v892
    %v894 = vpop.f32.mrb[0].mxu0
    %v895 = vpop.f32.mrb[0].mxu0
    %v896 = vadd.f32 %v808, %v895
    %v897 = vpop.f32.mrb[0].mxu0
    %898 = vdwg.mxu0
    %v899 = vadd.f32 %v670, %v893
    %v900 = vadd.f32 %v671, %v896
    %v901 = vpack.c.bf16 %v900, %v899
    %v902 = vld [vmem:[%s17] sm:$0xf]
    %v903 = vld [vmem:[%s17 + $0x4] sm:$0xf]
    %v904 = vld [vmem:[%s17 + $0x8] sm:$0xf]
    %v905 = vld [vmem:[%s17 + $0xc] sm:$0xf]
    %v910 = vunpack.c.l.b16 %v902
    %v911 = vunpack.c.l.b16 %v903
    %v912 = vunpack.c.l.b16 %v904
    %v913 = vunpack.c.l.b16 %v905
    %v914 = vpack.c.b16 %v911, %v910
    %v915 = vpack.c.b16 %v913, %v912
    %v919 = vsel %vm184, %v901, 0
    %921 = vmatprep.subr.bf16.mxu0 0
    %922 = vmatpush1.bf16.msra.mxu0 %v914
    %923 = vmatprep.subr.bf16.mxu0 0
    %924 = vmatpush1.bf16.msra.mxu0 %v915
    %925 = vmatprep.subr.bf16.mxu0 0
    %926 = vmatpush1.bf16.msra.mxu0 0
    %927 = vmatprep.subr.bf16.mxu0 0
    %928 = vmatpush1.bf16.msra.mxu0 0
    %929 = vmatprep.subr.bf16.mxu0 0
    %930 = vmatpush1.bf16.msra.mxu0 0
    %931 = vmatprep.subr.bf16.mxu0 0
    %932 = vmatpush1.bf16.msra.mxu0 0
    %933 = vmatprep.subr.bf16.mxu0 0
    %934 = vmatpush1.bf16.msra.mxu0 0
    %935 = vmatprep.subr.bf16.mxu0 0
    %936 = vmatpush1.bf16.msra.mxu0 0
    %937 = vmatprep.subr.bf16.mxu0 0
    %938 = vmatpush1.bf16.msra.mxu0 0
    %939 = vmatprep.subr.bf16.mxu0 0
    %940 = vmatpush1.bf16.msra.mxu0 0
    %941 = vmatprep.subr.bf16.mxu0 0
    %942 = vmatpush1.bf16.msra.mxu0 0
    %943 = vmatprep.subr.bf16.mxu0 0
    %944 = vmatpush1.bf16.msra.mxu0 0
    %945 = vmatprep.subr.bf16.mxu0 0
    %946 = vmatpush1.bf16.msra.mxu0 0
    %947 = vmatprep.subr.bf16.mxu0 0
    %948 = vmatpush1.bf16.msra.mxu0 0
    %949 = vmatprep.subr.bf16.mxu0 0
    %950 = vmatpush1.bf16.msra.mxu0 0
    %951 = vmatprep.subr.bf16.mxu0 0
    %952 = vmatpush1.bf16.msra.mxu0 0
    %953 = vmatprep.mubr.bf16.mxu0 0
    %954 = vmatmul.mubr.bf16.gmra.mrb[0].mxu0 %v919
    %v955 = vpop.f32.mrb[0].mxu0
    %v956 = vadd.f32 0.0, %v955
    %v957 = vpop.f32.mrb[0].mxu0
    %v958 = vpop.f32.mrb[0].mxu0
    %v959 = vadd.f32 0.0, %v958
    %v960 = vpop.f32.mrb[0].mxu0
    %961 = vdwg.mxu0
    %962 = vst [vmem:[#allocation2] sm:$0xff] %v956
    %963 = vst [vmem:[#allocation2 + $0x8] sm:$0xff] %v959
    // Predicated region
    $region74: #{trigram_forward.1} parent=1 // pred_check
      _
    $region75: #{trigram_forward.1} parent=1 // pred_check_branch
      %965 = sbr.rel (0) target = $region77
    $region76: #{trigram_forward.1} parent=1 // pred_region
      %s967 = ssub.s32 256, 256
      %968 = vsyncadd [#allocation3], %s967
      %s969 = sshll.u32 [#allocation2], 4
      %s970 = int_to_ptr.vmem [resolvable:$true] %s969
      %975 = dma.vmem_to_hbm [thread:$0]  %s970, 256, %s18, [#allocation3], 128, 128, 8
    $region77: #{trigram_forward.1} parent=1 // pred_fallthru
      _
    // Predicated region
    $region78: #{trigram_forward.1} parent=1 // pred_check
      _
    $region79: #{trigram_forward.1} parent=1 // pred_check_branch
      %977 = sbr.rel (0) target = $region81
    $region80: #{trigram_forward.1} parent=1 // pred_region
      %978 = dma.done [#allocation3], 256
    $region81: #{trigram_forward.1} parent=1 // pred_fallthru
      _
    %979 = vsyncpa [#allocation3], 1

</llo_original>
